<compile_context>
chip_gen: v7x
topology: tpu7x:2x2x1
jax: 0.10.0
libtpu: 0.0.40
codegen_flags: <defaults>
</compile_context>

<pallas_src>
import functools

import jax
import jax.numpy as jnp
from jax.experimental import pallas as pl
from jax.experimental.pallas import tpu as pltpu


def _ce_zloss_kernel(tgt_ref, tlogit_ref, logit_ref, ce_ref, z_ref,
                     m_run, s_run, xsum_run,
                     *, V, block_v,
                     ignore_index, lse_square_scale, label_smoothing,
                     need_class_mask):
    j = pl.program_id(1)                       # vocab chunk
    last_j = pl.num_programs(1) - 1

    @pl.when(j == 0)
    def _():
        m_run[...] = jnp.full_like(m_run, -jnp.inf)
        s_run[...] = jnp.zeros_like(s_run)
        if label_smoothing > 0.0:
            xsum_run[...] = jnp.zeros_like(xsum_run)

    x = logit_ref[...].astype(jnp.float32)     # (block_rows, block_v)

    def online_update(x_lse, x_sum):
        m_old = m_run[...]
        m_new = jnp.maximum(m_old, jnp.max(x_lse, axis=-1, keepdims=True))
        alpha = jnp.exp(m_old - m_new)         # exp(-inf - m) == 0 on chunk 0
        p_sum = jnp.sum(jnp.exp(x_lse - m_new), axis=-1, keepdims=True)
        s_run[...] = alpha * s_run[...] + p_sum
        m_run[...] = m_new
        if label_smoothing > 0.0:
            xsum_run[...] += jnp.sum(x_sum, axis=-1, keepdims=True)

    if need_class_mask:
        # Only the LAST vocab chunk has overhang columns; interior chunks skip
        # every masking compare/select (VALU is the binding slot on v7x).
        @pl.when(j != last_j)
        def _():
            online_update(x, x)

        @pl.when(j == last_j)
        def _():
            tail = V % block_v                 # static python int, > 0 here
            ok = jax.lax.broadcasted_iota(jnp.int32, x.shape, 1) < tail
            x_lse = jnp.where(ok, x, -jnp.inf)
            x_sum = jnp.where(ok, x, 0.0) if label_smoothing > 0.0 else x
            online_update(x_lse, x_sum)
    else:
        online_update(x, x)

    @pl.when(j == last_j)
    def _():
        t = tgt_ref[...]                       # (block_rows, 1) int32; padded rows == ignore_index
        lse = m_run[...] + jnp.log(s_run[...])
        valid = t != ignore_index
        nll = lse - tlogit_ref[...]            # gather was hoisted to the wrapper
        if label_smoothing > 0.0:
            smooth = lse - xsum_run[...] * (1.0 / V)
            ce_i = (1.0 - label_smoothing) * nll + label_smoothing * smooth
        else:
            ce_i = nll
        # jnp.where (select), never mask-multiply: keeps NaN/Inf from OOB or
        # ignored rows out of the outputs.
        ce_ref[...] = jnp.where(valid, ce_i, 0.0)
        z_ref[...] = jnp.where(valid, lse_square_scale * lse * lse, 0.0)


def cross_entropy_with_z_loss(logits, targets, *,
                              lse_square_scale=0.0,
                              reduction="mean",
                              ignore_index=-100,
                              label_smoothing=0.0,
                              return_z_loss=False,
                              out_dtype=jnp.float32,
                              block_rows=None,
                              block_v=None):
    # TODO(synk): per-class `weight` (default None in the module) is not implemented.
    assert reduction in ("mean", "sum", "none")
    N, V = logits.shape
    itemsize = jnp.dtype(logits.dtype).itemsize
    sub = max(8, 32 // itemsize)               # sublane packing multiple per dtype

    # ---- hoist the O(N) target-logit gather out of the streamed loop ----
    t_i32 = targets.astype(jnp.int32)
    t_safe = jnp.clip(t_i32, 0, V - 1)         # ignore_index rows are masked later
    tgt_logit = jnp.take_along_axis(
        logits, t_safe[:, None], axis=-1)[:, 0].astype(jnp.float32)

    # ---- tile sizing (independent of V via the vocab-chunk axis) ----
    if block_v is None:
        block_v = V if V <= 2048 else 2048     # multiple of 128 or == V
    if block_rows is None:
        # ~4 MiB of streamed input per tile, capped so the f32-expanded working
        # tile stays <= 4 MiB: double-buffered input + f32 temporaries then fit
        # v7x's 64 MiB VMEM with headroom (128 MiB parts have plenty).
        br = min((4 << 20) // (block_v * itemsize),
                 (4 << 20) // (block_v * 4))
        br = int(max(sub, min(1024, (br // sub) * sub)))
        n_pad = ((N + sub - 1) // sub) * sub
        block_rows = min(br, max(sub, n_pad))
        # keep >= 2 row blocks so both TensorCores / megacore cores get work.
        if pl.cdiv(N, block_rows) < 2 and N > sub:
            half = (pl.cdiv(N, 2) + sub - 1) // sub * sub
            block_rows = max(sub, half)
    Nb = pl.cdiv(N, block_rows)
    Jb = pl.cdiv(V, block_v)
    Np = Nb * block_rows
    need_class_mask = (V % block_v) != 0

    # ---- pad the tiny per-row side inputs to the row-block multiple ----
    targets2d = t_i32.reshape(N, 1)
    tlogit2d = tgt_logit.reshape(N, 1)
    if Np > N:
        pad = Np - N
        targets2d = jnp.concatenate(
            [targets2d, jnp.full((pad, 1), ignore_index, jnp.int32)], axis=0)
        tlogit2d = jnp.concatenate(
            [tlogit2d, jnp.zeros((pad, 1), jnp.float32)], axis=0)

    tile_bytes = block_rows * block_v * itemsize
    f32_tile = block_rows * block_v * 4
    # Double-buffered input tile + generous room for f32 temporaries; capped at
    # 48 MiB so it is safe on v7x (64 MiB physical) and raises the 16/32 MiB
    # scoped defaults on v5e/v6e (128 MiB physical).
    vmem_limit = int(min(48 << 20, max(24 << 20, 2 * tile_bytes + 6 * f32_tile)))

    kernel = functools.partial(
        _ce_zloss_kernel,
        V=V, block_v=block_v,
        ignore_index=ignore_index,
        lse_square_scale=lse_square_scale,
        label_smoothing=label_smoothing,
        need_class_mask=need_class_mask,
    )

    ce_rows, z_rows = pl.pallas_call(
        kernel,
        out_shape=(jax.ShapeDtypeStruct((Np, 1), jnp.float32),
                   jax.ShapeDtypeStruct((Np, 1), jnp.float32)),
        grid_spec=pltpu.PrefetchScalarGridSpec(
            num_scalar_prefetch=0,
            grid=(Nb, Jb),
            in_specs=[
                pl.BlockSpec((block_rows, 1), lambda i, j: (i, 0)),
                pl.BlockSpec((block_rows, 1), lambda i, j: (i, 0)),
                pl.BlockSpec((block_rows, block_v), lambda i, j: (i, j)),
            ],
            out_specs=[
                pl.BlockSpec((block_rows, 1), lambda i, j: (i, 0)),
                pl.BlockSpec((block_rows, 1), lambda i, j: (i, 0)),
            ],
            scratch_shapes=[
                pltpu.VMEM((block_rows, 1), jnp.float32),   # running max
                pltpu.VMEM((block_rows, 1), jnp.float32),   # running sum-exp
                pltpu.VMEM((block_rows, 1), jnp.float32),   # running sum(x) (smoothing)
            ],
        ),
        compiler_params=pltpu.CompilerParams(
            dimension_semantics=("parallel", "arbitrary"),
            vmem_limit_bytes=vmem_limit),
    )(targets2d, tlogit2d, logits)

    ce_rows = ce_rows[:, 0]
    z_rows = z_rows[:, 0]

    if reduction == "none":
        z_out = z_rows[:N].astype(out_dtype)
        total = (ce_rows[:N] + z_rows[:N]).astype(out_dtype)
    else:
        ce_sum = jnp.sum(ce_rows)
        z_sum = jnp.sum(z_rows)
        if reduction == "mean":
            # NOTE: like PyTorch, returns NaN if every target == ignore_index.
            cnt = jnp.sum((t_i32 != ignore_index).astype(jnp.float32))
            ce_v = ce_sum / cnt
            z_v = z_sum / cnt
        else:  # "sum"
            ce_v = ce_sum
            z_v = z_sum
        z_out = z_v.astype(out_dtype)
        total = (ce_v + z_v).astype(out_dtype)

    if return_z_loss:
        return total, z_out
    return total


def _reference(logits, targets, *, lse_square_scale, reduction, ignore_index,
               label_smoothing):
    logits = logits.astype(jnp.float32)
    valid = targets != ignore_index
    lse = jax.nn.logsumexp(logits, axis=-1)
    logp = logits - lse[:, None]
    t_safe = jnp.where(valid, targets, 0)
    nll = -jnp.take_along_axis(logp, t_safe[:, None], axis=-1)[:, 0]
    ce_i = (1.0 - label_smoothing) * nll + label_smoothing * (-logp.mean(-1))
    ce_i = jnp.where(valid, ce_i, 0.0)
    z_i = jnp.where(valid, lse_square_scale * lse ** 2, 0.0)
    cnt = valid.sum().astype(jnp.float32)
    if reduction == "mean":
        ce, z = ce_i.sum() / cnt, z_i.sum() / cnt
    else:
        ce, z = ce_i.sum(), z_i.sum()
    return ce + z, z


if __name__ == "__main__":
    key = jax.random.PRNGKey(0)

    # ---- test 1: aligned shapes, label smoothing + z-loss, mean reduction ----
    k1, k2 = jax.random.split(key)
    N, V = 16, 128
    lse_square_scale = 1e-4
    label_smoothing = 0.1
    ignore_index = -100

    logits = jax.random.normal(k1, (N, V), dtype=jnp.float32) * 2.0
    targets = jax.random.randint(k2, (N,), 0, V, dtype=jnp.int32)
    targets = targets.at[3].set(ignore_index)
    targets = targets.at[11].set(ignore_index)

    total, z = cross_entropy_with_z_loss(
        logits, targets,
        lse_square_scale=lse_square_scale,
        reduction="mean",
        ignore_index=ignore_index,
        label_smoothing=label_smoothing,
        return_z_loss=True,
    )
    total = jax.block_until_ready(total)
    z = jax.block_until_ready(z)

    ref_total, ref_z = _reference(
        logits, targets,
        lse_square_scale=lse_square_scale,
        reduction="mean",
        ignore_index=ignore_index,
        label_smoothing=label_smoothing,
    )
    assert jnp.allclose(total, ref_total, rtol=1e-5, atol=1e-4), (total, ref_total)
    assert jnp.allclose(z, ref_z, rtol=1e-5, atol=1e-4), (z, ref_z)

    # ---- test 2: ragged N and V, multiple row blocks + vocab chunks, sum ----
    k3, k4 = jax.random.split(k2)
    N2, V2 = 13, 200
    logits2 = jax.random.normal(k3, (N2, V2), dtype=jnp.float32) * 3.0
    targets2 = jax.random.randint(k4, (N2,), 0, V2, dtype=jnp.int32)
    targets2 = targets2.at[5].set(ignore_index)

    total2, z2 = cross_entropy_with_z_loss(
        logits2, targets2,
        lse_square_scale=5e-4,
        reduction="sum",
        ignore_index=ignore_index,
        label_smoothing=0.0,
        return_z_loss=True,
        block_rows=8, block_v=128,   # force row padding + last-chunk class mask + online LSE
    )
    total2 = jax.block_until_ready(total2)
    z2 = jax.block_until_ready(z2)

    ref_total2, ref_z2 = _reference(
        logits2, targets2,
        lse_square_scale=5e-4,
        reduction="sum",
        ignore_index=ignore_index,
        label_smoothing=0.0,
    )
    assert jnp.allclose(total2, ref_total2, rtol=1e-5, atol=1e-4), (total2, ref_total2)
    assert jnp.allclose(z2, ref_z2, rtol=1e-5, atol=1e-4), (z2, ref_z2)

    # ---- test 3: bf16 logits (sublane multiple 16), mean, no smoothing ----
    k5, k6 = jax.random.split(k4)
    logits3 = (jax.random.normal(k5, (24, 384), dtype=jnp.float32) * 2.0
               ).astype(jnp.bfloat16)
    targets3 = jax.random.randint(k6, (24,), 0, 384, dtype=jnp.int32)
    total3, z3 = cross_entropy_with_z_loss(
        logits3, targets3,
        lse_square_scale=1e-4,
        reduction="mean",
        ignore_index=ignore_index,
        label_smoothing=0.0,
        return_z_loss=True,
    )
    total3 = jax.block_until_ready(total3)
    z3 = jax.block_until_ready(z3)
    ref_total3, ref_z3 = _reference(
        logits3.astype(jnp.float32), targets3,
        lse_square_scale=1e-4,
        reduction="mean",
        ignore_index=ignore_index,
        label_smoothing=0.0,
    )
    assert jnp.allclose(total3, ref_total3, rtol=2e-2, atol=2e-2), (total3, ref_total3)
    assert jnp.allclose(z3, ref_z3, rtol=2e-2, atol=2e-2), (z3, ref_z3)

    print("KERNEL_OK")
</pallas_src>

<mosaic_0001>
module attributes {stable_mosaic.version = 11 : i64} {
  func.func @_ce_zloss_kernel(%arg0: i32, %arg1: i32, %arg2: memref<8x1xi32, #tpu.memory_space<vmem>>, %arg3: memref<8x1xf32, #tpu.memory_space<vmem>>, %arg4: memref<8x128xf32, #tpu.memory_space<vmem>>, %arg5: memref<8x1xf32, #tpu.memory_space<vmem>>, %arg6: memref<8x1xf32, #tpu.memory_space<vmem>>, %arg7: memref<8x1xf32, #tpu.memory_space<vmem>>, %arg8: memref<8x1xf32, #tpu.memory_space<vmem>>, %arg9: memref<8x1xf32, #tpu.memory_space<vmem>>) attributes {dimension_semantics = [#tpu.dimension_semantics<parallel>, #tpu.dimension_semantics<arbitrary>], iteration_bounds = array<i64: 2, 1>, scalar_prefetch = 0 : i64, scratch_operands = 3 : i64, tpu.core_type = #tpu.core_type<tc>, window_params = [{transform_indices = @transform_0, window_bounds = array<i64: 8, 1>}, {transform_indices = @transform_1, window_bounds = array<i64: 8, 1>}, {transform_indices = @transform_2, window_bounds = array<i64: 8, 128>}, {transform_indices = @transform_3, window_bounds = array<i64: 8, 1>}, {transform_indices = @transform_4, window_bounds = array<i64: 8, 1>}]} {
    %c0_i32 = arith.constant 0 : i32
    %0 = arith.cmpi eq, %arg1, %c0_i32 : i32
    %1 = arith.extui %0 : i1 to i32
    %c0_i32_0 = arith.constant 0 : i32
    %2 = arith.cmpi ne, %1, %c0_i32_0 : i32
    scf.if %2 {
      %cst_18 = arith.constant 0xFF800000 : f32
      %28 = vector.broadcast %cst_18 : f32 to vector<8x1xf32>
      %c0_19 = arith.constant 0 : index
      %c0_20 = arith.constant 0 : index
      %29 = vector.load %arg7[%c0_19, %c0_20] : memref<8x1xf32, #tpu.memory_space<vmem>>, vector<8x1xf32>
      tpu.vector_store %arg7[%c0_19, %c0_20], %28 {strides = array<i32>} : memref<8x1xf32, #tpu.memory_space<vmem>>, vector<8x1xf32>,
      %cst_21 = arith.constant 0.000000e+00 : f32
      %30 = vector.broadcast %cst_21 : f32 to vector<8x1xf32>
      %c0_22 = arith.constant 0 : index
      %c0_23 = arith.constant 0 : index
      %31 = vector.load %arg8[%c0_22, %c0_23] : memref<8x1xf32, #tpu.memory_space<vmem>>, vector<8x1xf32>
      tpu.vector_store %arg8[%c0_22, %c0_23], %30 {strides = array<i32>} : memref<8x1xf32, #tpu.memory_space<vmem>>, vector<8x1xf32>,
      %cst_24 = arith.constant 0.000000e+00 : f32
      %32 = vector.broadcast %cst_24 : f32 to vector<8x1xf32>
      %c0_25 = arith.constant 0 : index
      %c0_26 = arith.constant 0 : index
      %33 = vector.load %arg9[%c0_25, %c0_26] : memref<8x1xf32, #tpu.memory_space<vmem>>, vector<8x1xf32>
      tpu.vector_store %arg9[%c0_25, %c0_26], %32 {strides = array<i32>} : memref<8x1xf32, #tpu.memory_space<vmem>>, vector<8x1xf32>,
    } else {
    }
    %c0 = arith.constant 0 : index
    %c0_1 = arith.constant 0 : index
    %3 = vector.load %arg4[%c0, %c0_1] : memref<8x128xf32, #tpu.memory_space<vmem>>, vector<8x128xf32>
    %c0_2 = arith.constant 0 : index
    %c0_3 = arith.constant 0 : index
    %4 = vector.load %arg7[%c0_2, %c0_3] : memref<8x1xf32, #tpu.memory_space<vmem>>, vector<8x1xf32>
    %cst = arith.constant dense<0xFF800000> : vector<8xf32>
    %5 = vector.multi_reduction <maximumf>, %3, %cst [1] : vector<8x128xf32> to vector<8xf32>
    %6 = vector.shape_cast %5 : vector<8xf32> to vector<8x1xf32>
    %7 = arith.maximumf %4, %6 : vector<8x1xf32>
    %8 = arith.subf %4, %7 : vector<8x1xf32>
    %9 = math.exp %8 : vector<8x1xf32>
    %10 = vector.broadcast %7 : vector<8x1xf32> to vector<8x128xf32>
    %11 = arith.subf %3, %10 : vector<8x128xf32>
    %12 = math.exp %11 : vector<8x128xf32>
    %cst_4 = arith.constant dense<0.000000e+00> : vector<8xf32>
    %13 = vector.multi_reduction <add>, %12, %cst_4 [1] : vector<8x128xf32> to vector<8xf32>
    %14 = vector.shape_cast %13 : vector<8xf32> to vector<8x1xf32>
    %c0_5 = arith.constant 0 : index
    %c0_6 = arith.constant 0 : index
    %15 = vector.load %arg8[%c0_5, %c0_6] : memref<8x1xf32, #tpu.memory_space<vmem>>, vector<8x1xf32>
    %16 = arith.mulf %9, %15 : vector<8x1xf32>
    %17 = arith.addf %16, %14 : vector<8x1xf32>
    %c0_7 = arith.constant 0 : index
    %c0_8 = arith.constant 0 : index
    %18 = vector.load %arg8[%c0_7, %c0_8] : memref<8x1xf32, #tpu.memory_space<vmem>>, vector<8x1xf32>
    tpu.vector_store %arg8[%c0_7, %c0_8], %17 {strides = array<i32>} : memref<8x1xf32, #tpu.memory_space<vmem>>, vector<8x1xf32>,
    %c0_9 = arith.constant 0 : index
    %c0_10 = arith.constant 0 : index
    %19 = vector.load %arg7[%c0_9, %c0_10] : memref<8x1xf32, #tpu.memory_space<vmem>>, vector<8x1xf32>
    tpu.vector_store %arg7[%c0_9, %c0_10], %7 {strides = array<i32>} : memref<8x1xf32, #tpu.memory_space<vmem>>, vector<8x1xf32>,
    %c0_11 = arith.constant 0 : index
    %c0_12 = arith.constant 0 : index
    %20 = vector.load %arg9[%c0_11, %c0_12] : memref<8x1xf32, #tpu.memory_space<vmem>>, vector<8x1xf32>
    %cst_13 = arith.constant dense<0.000000e+00> : vector<8xf32>
    %21 = vector.multi_reduction <add>, %3, %cst_13 [1] : vector<8x128xf32> to vector<8xf32>
    %22 = vector.shape_cast %21 : vector<8xf32> to vector<8x1xf32>
    %23 = arith.addf %20, %22 : vector<8x1xf32>
    %c0_14 = arith.constant 0 : index
    %c0_15 = arith.constant 0 : index
    %24 = vector.load %arg9[%c0_14, %c0_15] : memref<8x1xf32, #tpu.memory_space<vmem>>, vector<8x1xf32>
    tpu.vector_store %arg9[%c0_14, %c0_15], %23 {strides = array<i32>} : memref<8x1xf32, #tpu.memory_space<vmem>>, vector<8x1xf32>,
    %c0_i32_16 = arith.constant 0 : i32
    %25 = arith.cmpi eq, %arg1, %c0_i32_16 : i32
    %26 = arith.extui %25 : i1 to i32
    %c0_i32_17 = arith.constant 0 : i32
    %27 = arith.cmpi ne, %26, %c0_i32_17 : i32
    scf.if %27 {
      %c0_18 = arith.constant 0 : index
      %c0_19 = arith.constant 0 : index
      %28 = vector.load %arg2[%c0_18, %c0_19] : memref<8x1xi32, #tpu.memory_space<vmem>>, vector<8x1xi32>
      %c0_20 = arith.constant 0 : index
      %c0_21 = arith.constant 0 : index
      %29 = vector.load %arg7[%c0_20, %c0_21] : memref<8x1xf32, #tpu.memory_space<vmem>>, vector<8x1xf32>
      %c0_22 = arith.constant 0 : index
      %c0_23 = arith.constant 0 : index
      %30 = vector.load %arg8[%c0_22, %c0_23] : memref<8x1xf32, #tpu.memory_space<vmem>>, vector<8x1xf32>
      %31 = math.log %30 : vector<8x1xf32>
      %32 = arith.addf %29, %31 : vector<8x1xf32>
      %c-100_i32 = arith.constant -100 : i32
      %33 = vector.broadcast %c-100_i32 : i32 to vector<8x1xi32>
      %34 = arith.cmpi ne, %28, %33 : vector<8x1xi32>
      %c0_24 = arith.constant 0 : index
      %c0_25 = arith.constant 0 : index
      %35 = vector.load %arg3[%c0_24, %c0_25] : memref<8x1xf32, #tpu.memory_space<vmem>>, vector<8x1xf32>
      %36 = arith.subf %32, %35 : vector<8x1xf32>
      %c0_26 = arith.constant 0 : index
      %c0_27 = arith.constant 0 : index
      %37 = vector.load %arg9[%c0_26, %c0_27] : memref<8x1xf32, #tpu.memory_space<vmem>>, vector<8x1xf32>
      %cst_28 = arith.constant 7.812500e-03 : f32
      %38 = vector.broadcast %cst_28 : f32 to vector<8x1xf32>
      %39 = arith.mulf %37, %38 : vector<8x1xf32>
      %40 = arith.subf %32, %39 : vector<8x1xf32>
      %cst_29 = arith.constant 0.899999976 : f32
      %41 = vector.broadcast %cst_29 : f32 to vector<8x1xf32>
      %42 = arith.mulf %41, %36 : vector<8x1xf32>
      %cst_30 = arith.constant 1.000000e-01 : f32
      %43 = vector.broadcast %cst_30 : f32 to vector<8x1xf32>
      %44 = arith.mulf %43, %40 : vector<8x1xf32>
      %45 = arith.addf %42, %44 : vector<8x1xf32>
      %cst_31 = arith.constant 0.000000e+00 : f32
      %46 = vector.broadcast %cst_31 : f32 to vector<8x1xf32>
      %47 = arith.select %34, %45, %46 : vector<8x1xi1>, vector<8x1xf32>
      %c0_32 = arith.constant 0 : index
      %c0_33 = arith.constant 0 : index
      %48 = vector.load %arg5[%c0_32, %c0_33] : memref<8x1xf32, #tpu.memory_space<vmem>>, vector<8x1xf32>
      tpu.vector_store %arg5[%c0_32, %c0_33], %47 {strides = array<i32>} : memref<8x1xf32, #tpu.memory_space<vmem>>, vector<8x1xf32>,
      %cst_34 = arith.constant 9.99999974E-5 : f32
      %49 = vector.broadcast %cst_34 : f32 to vector<8x1xf32>
      %50 = arith.mulf %49, %32 : vector<8x1xf32>
      %51 = arith.mulf %50, %32 : vector<8x1xf32>
      %cst_35 = arith.constant 0.000000e+00 : f32
      %52 = vector.broadcast %cst_35 : f32 to vector<8x1xf32>
      %53 = arith.select %34, %51, %52 : vector<8x1xi1>, vector<8x1xf32>
      %c0_36 = arith.constant 0 : index
      %c0_37 = arith.constant 0 : index
      %54 = vector.load %arg6[%c0_36, %c0_37] : memref<8x1xf32, #tpu.memory_space<vmem>>, vector<8x1xf32>
      tpu.vector_store %arg6[%c0_36, %c0_37], %53 {strides = array<i32>} : memref<8x1xf32, #tpu.memory_space<vmem>>, vector<8x1xf32>,
    } else {
    }
    return
  }
  func.func @transform_0(%arg0: i32, %arg1: i32) -> (i32, i32) {
    %c0_i32 = arith.constant 0 : i32
    %c0_i32_0 = arith.constant 0 : i32
    return %arg0, %c0_i32 : i32, i32
  }
  func.func @transform_1(%arg0: i32, %arg1: i32) -> (i32, i32) {
    %c0_i32 = arith.constant 0 : i32
    %c0_i32_0 = arith.constant 0 : i32
    return %arg0, %c0_i32 : i32, i32
  }
  func.func @transform_2(%arg0: i32, %arg1: i32) -> (i32, i32) {
    %c0_i32 = arith.constant 0 : i32
    return %arg0, %arg1 : i32, i32
  }
  func.func @transform_3(%arg0: i32, %arg1: i32) -> (i32, i32) {
    %c0_i32 = arith.constant 0 : i32
    %c0_i32_0 = arith.constant 0 : i32
    return %arg0, %c0_i32 : i32, i32
  }
  func.func @transform_4(%arg0: i32, %arg1: i32) -> (i32, i32) {
    %c0_i32 = arith.constant 0 : i32
    %c0_i32_0 = arith.constant 0 : i32
    return %arg0, %c0_i32 : i32, i32
  }
}

</mosaic_0001>

<llo_original>
// kernel: tpu_custom_call.1
$region0: #{tpu_custom_call.1}
  #allocation0 [shape = 'u32[]', space=smem, size = 0x4, offset = 0x4, fixed_abs, tag = 'smem constant byte address 0x4 - core index']
  #allocation1 [shape = 'u32[144,128]{1,0:T(1,128)}', space=vmem, size = 0x12000, scoped, tag = 'internal scratch']
  #allocation2 [shape = 'f32[8,1]{1,0:T(8,128)}', space=vmem, size = 0x1000, scoped, tag = 'scratch operand']
  #allocation3 [shape = 'f32[8,1]{1,0:T(8,128)}', space=vmem, size = 0x1000, scoped, tag = 'scratch operand']
  #allocation4 [shape = 'f32[8,1]{1,0:T(8,128)}', space=vmem, size = 0x1000, scoped, tag = 'scratch operand']
  %s0 = inlined_call_operand.vmem [shape: s32[16,1], index: 0, kind: input, shape index: {}]
  %s1 = inlined_call_operand.vmem [shape: f32[16,1], index: 1, kind: input, shape index: {}]
  %s2 = inlined_call_operand.vmem [shape: f32[16,128], index: 2, kind: input, shape index: {}]
  %s3 = inlined_call_operand.vmem [shape: f32[16,1], index: 3, kind: output, shape index: {0}]
  %s4 = inlined_call_operand.vmem [shape: f32[16,1], index: 4, kind: output, shape index: {1}]
  %5 = xla_tuple %s3, %s4
  %s6 = sld [smem:[#allocation0]]
  $region61: #{tpu_custom_call.1} parent=0
    _
  %s8 = ssub.s32 1, %s6
  %s9 = scalar_select 0, %s8, %s6
  loop: start=0, step=1, limit=4
  $region2: #{tpu_custom_call.1} parent=0 // loop_pre_header
    _
  $region3: #{tpu_custom_call.1} parent=0 // loop_header
    %s11 = sphi 0, %s15
    %p12 = scmp.ge.s32.totalorder %s11, 4
    %s18 = sphi 0, %s30
    %s19 = sphi 0, %s26
    %s20 = sphi 0, %s18
    %s21 = sphi 0, %s19
    %s22 = sphi 0, %s20
    %s23 = sphi 0, %s21
    %s33 = sphi 0, %s35
    %s36 = sphi 0, %s33
    %s37 = sphi 0, %s36
    %s53 = sphi 0, %s37
    %s59 = sphi 0, %s61
    %s62 = sphi 0, %s59
    %s63 = sphi 0, %s62
    %s79 = sphi 0, %s63
    %s87 = sphi 0, %s89
    %s90 = sphi 0, %s87
    %s91 = sphi 0, %s90
    %s107 = sphi 0, %s91
    %s113 = sphi 0, %s115
    %s116 = sphi 0, %s113
    %s117 = sphi 0, %s116
    %s133 = sphi 0, %s117
    %s139 = sphi 0, %s141
    %s142 = sphi 0, %s139
    %s143 = sphi 0, %s142
    %s159 = sphi 0, %s143
  $region4: #{tpu_custom_call.1} parent=0 // loop_header_branch
    %14 = sbr.rel (%p12) target = $region8
  $region5: #{tpu_custom_call.1} parent=0 // loop_body
    %s16 = ssub.s32 %s11, 1
    %s17 = ssub.s32 %s11, 2
    %s24 = sadd.s32 1, %s19
    %p25 = scmp.ge.s32.totalorder %s24, 1
    %s26 = scalar_select %p25, 0, %s24
    %s27 = sadd.s32 1, %s18
    %s28 = scalar_select %p25, %s27, %s18
    %p29 = scmp.ge.s32.totalorder %s28, 2
    %s30 = scalar_select %p29, 0, %s28
    %s31 = ssub.s32 %s18, %s30
    %p32 = scmp.eq.s32.totalorder %s31, 0
    %s34 = sadd.s32 %s33, 1
    %s35 = scalar_select %p32, %s33, %s34
    %p38 = pneg %p32
    %p39 = scmp.eq.s32.totalorder %s11, 1
    %p40 = por %p38, %p39
    %p41 = scmp.ne.s32.totalorder %s33, %s36
    %p42 = scmp.eq.s32.totalorder %s11, 0
    %p43 = por %p41, %p42
    %p44 = scmp.ne.s32.totalorder %s33, %s36
    %p45 = scmp.eq.s32.totalorder %s16, 1
    %p46 = por %p44, %p45
    %p47 = scmp.ne.s32.totalorder %s36, %s37
    %p48 = scmp.eq.s32.totalorder %s16, 0
    %p49 = por %p47, %p48
    %p50 = scmp.ne.s32.totalorder %s36, %s37
    %p51 = scmp.eq.s32.totalorder %s17, 1
    %p52 = por %p50, %p51
    %p54 = scmp.ne.s32.totalorder %s37, %s53
    %p55 = scmp.eq.s32.totalorder %s17, 0
    %p56 = por %p54, %p55
    %s57 = ssub.s32 %s18, %s30
    %p58 = scmp.eq.s32.totalorder %s57, 0
    %s60 = sadd.s32 %s59, 1
    %s61 = scalar_select %p58, %s59, %s60
    %p64 = pneg %p58
    %p65 = scmp.eq.s32.totalorder %s11, 1
    %p66 = por %p64, %p65
    %p67 = scmp.ne.s32.totalorder %s59, %s62
    %p68 = scmp.eq.s32.totalorder %s11, 0
    %p69 = por %p67, %p68
    %p70 = scmp.ne.s32.totalorder %s59, %s62
    %p71 = scmp.eq.s32.totalorder %s16, 1
    %p72 = por %p70, %p71
    %p73 = scmp.ne.s32.totalorder %s62, %s63
    %p74 = scmp.eq.s32.totalorder %s16, 0
    %p75 = por %p73, %p74
    %p76 = scmp.ne.s32.totalorder %s62, %s63
    %p77 = scmp.eq.s32.totalorder %s17, 1
    %p78 = por %p76, %p77
    %p80 = scmp.ne.s32.totalorder %s63, %s79
    %p81 = scmp.eq.s32.totalorder %s17, 0
    %p82 = por %p80, %p81
    %s83 = ssub.s32 %s18, %s30
    %s84 = ssub.s32 %s19, %s26
    %s85 = sor.u32 %s83, %s84
    %p86 = scmp.eq.s32.totalorder %s85, 0
    %s88 = sadd.s32 %s87, 1
    %s89 = scalar_select %p86, %s87, %s88
    %p92 = pneg %p86
    %p93 = scmp.eq.s32.totalorder %s11, 1
    %p94 = por %p92, %p93
    %p95 = scmp.ne.s32.totalorder %s87, %s90
    %p96 = scmp.eq.s32.totalorder %s11, 0
    %p97 = por %p95, %p96
    %p98 = scmp.ne.s32.totalorder %s87, %s90
    %p99 = scmp.eq.s32.totalorder %s16, 1
    %p100 = por %p98, %p99
    %p101 = scmp.ne.s32.totalorder %s90, %s91
    %p102 = scmp.eq.s32.totalorder %s16, 0
    %p103 = por %p101, %p102
    %p104 = scmp.ne.s32.totalorder %s90, %s91
    %p105 = scmp.eq.s32.totalorder %s17, 1
    %p106 = por %p104, %p105
    %p108 = scmp.ne.s32.totalorder %s91, %s107
    %p109 = scmp.eq.s32.totalorder %s17, 0
    %p110 = por %p108, %p109
    %s111 = ssub.s32 %s18, %s30
    %p112 = scmp.eq.s32.totalorder %s111, 0
    %s114 = sadd.s32 %s113, 1
    %s115 = scalar_select %p112, %s113, %s114
    %p118 = pneg %p112
    %p119 = scmp.eq.s32.totalorder %s11, 1
    %p120 = por %p118, %p119
    %p121 = scmp.ne.s32.totalorder %s113, %s116
    %p122 = scmp.eq.s32.totalorder %s11, 0
    %p123 = por %p121, %p122
    %p124 = scmp.ne.s32.totalorder %s113, %s116
    %p125 = scmp.eq.s32.totalorder %s16, 1
    %p126 = por %p124, %p125
    %p127 = scmp.ne.s32.totalorder %s116, %s117
    %p128 = scmp.eq.s32.totalorder %s16, 0
    %p129 = por %p127, %p128
    %p130 = scmp.ne.s32.totalorder %s116, %s117
    %p131 = scmp.eq.s32.totalorder %s17, 1
    %p132 = por %p130, %p131
    %p134 = scmp.ne.s32.totalorder %s117, %s133
    %p135 = scmp.eq.s32.totalorder %s17, 0
    %p136 = por %p134, %p135
    %s137 = ssub.s32 %s18, %s30
    %p138 = scmp.eq.s32.totalorder %s137, 0
    %s140 = sadd.s32 %s139, 1
    %s141 = scalar_select %p138, %s139, %s140
    %p144 = pneg %p138
    %p145 = scmp.eq.s32.totalorder %s11, 1
    %p146 = por %p144, %p145
    %p147 = scmp.ne.s32.totalorder %s139, %s142
    %p148 = scmp.eq.s32.totalorder %s11, 0
    %p149 = por %p147, %p148
    %p150 = scmp.ne.s32.totalorder %s139, %s142
    %p151 = scmp.eq.s32.totalorder %s16, 1
    %p152 = por %p150, %p151
    %p153 = scmp.ne.s32.totalorder %s142, %s143
    %p154 = scmp.eq.s32.totalorder %s16, 0
    %p155 = por %p153, %p154
    %p156 = scmp.ne.s32.totalorder %s142, %s143
    %p157 = scmp.eq.s32.totalorder %s17, 1
    %p158 = por %p156, %p157
    %p160 = scmp.ne.s32.totalorder %s143, %s159
    %p161 = scmp.eq.s32.totalorder %s17, 0
    %p162 = por %p160, %p161
    %p163 = scmp.le.s32.totalorder 1, %s11
    %p164 = scmp.lt.s32.totalorder %s11, 3
    %p165 = pnand %p163, %p164
    %p166 = pneg %p165
    // Predicated region
    $region9: #{tpu_custom_call.1} parent=5 // pred_check
      _
    $region10: #{tpu_custom_call.1} parent=5 // pred_check_branch
      %168 = sbr.rel (%p165) target = $region12
    $region11: #{tpu_custom_call.1} parent=5 // pred_region
      %s169 = ssub.s32 %s11, 1
    $region12: #{tpu_custom_call.1} parent=5 // pred_fallthru
      _
    %p170 = scmp.lt.s32.totalorder %s11, 2
    // Predicated region
    $region13: #{tpu_custom_call.1} parent=5 // pred_check
      %p171 = pneg %p170
    $region14: #{tpu_custom_call.1} parent=5 // pred_check_branch
      %173 = sbr.rel (%p171) target = $region16
    $region15: #{tpu_custom_call.1} parent=5 // pred_region
      // Predicated region
      $region17: #{tpu_custom_call.1} parent=15 // pred_check
        %p174 = pneg %p43
      $region18: #{tpu_custom_call.1} parent=15 // pred_check_branch
        %176 = sbr.rel (%p174) target = $region20
      $region19: #{tpu_custom_call.1} parent=15 // pred_region
        %p177 = scmp.lt.s32.totalorder %s18, 1
        %s178 = scalar_select %p177, %s18, 1
        %s179 = smul.addr %s178, 8
        %s180 = scalar_lea.vmem %s0, %s179
      $region20: #{tpu_custom_call.1} parent=15 // pred_fallthru
        _
      // Predicated region
      $region21: #{tpu_custom_call.1} parent=15 // pred_check
        %p181 = pneg %p69
      $region22: #{tpu_custom_call.1} parent=15 // pred_check_branch
        %183 = sbr.rel (%p181) target = $region24
      $region23: #{tpu_custom_call.1} parent=15 // pred_region
        %p184 = scmp.lt.s32.totalorder %s18, 1
        %s185 = scalar_select %p184, %s18, 1
        %s186 = smul.addr %s185, 8
        %s187 = scalar_lea.vmem %s1, %s186
      $region24: #{tpu_custom_call.1} parent=15 // pred_fallthru
        _
      // Predicated region
      $region25: #{tpu_custom_call.1} parent=15 // pred_check
        %p188 = pneg %p97
      $region26: #{tpu_custom_call.1} parent=15 // pred_check_branch
        %190 = sbr.rel (%p188) target = $region28
      $region27: #{tpu_custom_call.1} parent=15 // pred_region
        %p191 = scmp.lt.s32.totalorder %s18, 1
        %s192 = scalar_select %p191, %s18, 1
        %p193 = scmp.lt.s32.totalorder %s19, 0
        %s194 = scalar_select %p193, %s19, 0
        %s195 = sadd.s32 %s194, %s192
        %s196 = smul.addr %s195, 8
        %s197 = scalar_lea.vmem %s2, %s196
      $region28: #{tpu_custom_call.1} parent=15 // pred_fallthru
        _
    $region16: #{tpu_custom_call.1} parent=5 // pred_fallthru
      _
    %p198 = scmp.le.s32.totalorder 1, %s11
    %p199 = scmp.lt.s32.totalorder %s11, 3
    %p200 = pnand %p198, %p199
    %p201 = pneg %p200
    // Predicated region
    $region29: #{tpu_custom_call.1} parent=5 // pred_check
      _
    $region30: #{tpu_custom_call.1} parent=5 // pred_check_branch
      %203 = sbr.rel (%p200) target = $region32
    $region31: #{tpu_custom_call.1} parent=5 // pred_region
      %s204 = ssub.s32 %s11, 1
      %p205 = scmp.lt.s32.totalorder %s20, 1
      %s206 = scalar_select %p205, %s20, 1
      %s207 = smul.addr %s206, 8
      %s208 = scalar_lea.vmem %s0, %s207
      %p209 = pneg %p49
      %p210 = pneg %p46
      %p211 = scmp.lt.s32.totalorder %s20, 1
      %s212 = scalar_select %p211, %s20, 1
      %s213 = smul.addr %s212, 8
      %s214 = scalar_lea.vmem %s1, %s213
      %p215 = pneg %p75
      %p216 = pneg %p72
      %p217 = scmp.lt.s32.totalorder %s20, 1
      %s218 = scalar_select %p217, %s20, 1
      %p219 = scmp.lt.s32.totalorder %s21, 0
      %s220 = scalar_select %p219, %s21, 0
      %s221 = sadd.s32 %s220, %s218
      %s222 = smul.addr %s221, 8
      %s223 = scalar_lea.vmem %s2, %s222
      %p224 = pneg %p103
      %p225 = pneg %p100
      %p226 = pneg %p129
      %p227 = pneg %p126
      %p228 = scmp.lt.s32.totalorder %s20, 1
      %s229 = scalar_select %p228, %s20, 1
      %s230 = smul.addr %s229, 8
      %s231 = scalar_lea.vmem %s3, %s230
      %p232 = pneg %p155
      %p233 = pneg %p152
      %p234 = scmp.lt.s32.totalorder %s20, 1
      %s235 = scalar_select %p234, %s20, 1
      %s236 = smul.addr %s235, 8
      %s237 = scalar_lea.vmem %s4, %s236
      %p238 = scmp.lt.s32.totalorder %s20, 1
      %s239 = scalar_select %p238, %s20, 1
      %s240 = smul.addr %s239, 8
      %s241 = scalar_lea.vmem %s0, %s240
      %p242 = scmp.lt.s32.totalorder %s20, 1
      %s243 = scalar_select %p242, %s20, 1
      %s244 = smul.addr %s243, 8
      %s245 = scalar_lea.vmem %s1, %s244
      %p246 = scmp.lt.s32.totalorder %s20, 1
      %s247 = scalar_select %p246, %s20, 1
      %p248 = scmp.lt.s32.totalorder %s21, 0
      %s249 = scalar_select %p248, %s21, 0
      %s250 = sadd.s32 %s249, %s247
      %s251 = smul.addr %s250, 8
      %s252 = scalar_lea.vmem %s2, %s251
      %p253 = scmp.lt.s32.totalorder %s20, 1
      %s254 = scalar_select %p253, %s20, 1
      %s255 = smul.addr %s254, 8
      %s256 = scalar_lea.vmem %s3, %s255
      %p257 = scmp.lt.s32.totalorder %s20, 1
      %s258 = scalar_select %p257, %s20, 1
      %s259 = smul.addr %s258, 8
      %s260 = scalar_lea.vmem %s4, %s259
      %p261 = scmp.eq.s32.totalorder %s21, 0
      // Predicated region
      $region33: #{tpu_custom_call.1} parent=31 // pred_check
        %p262 = pneg %p261
      $region34: #{tpu_custom_call.1} parent=31 // pred_check_branch
        %264 = sbr.rel (%p262) target = $region36
      $region35: #{tpu_custom_call.1} parent=31 // pred_region
        %vm265 = vcmask 7168
        %266 = vst.msk [vmem:[#allocation2] sm:$0xff] %vm265, -inf
        %267 = vst.msk [vmem:[#allocation3] sm:$0xff] %vm265, 0.0
        %268 = vst.msk [vmem:[#allocation4] sm:$0xff] %vm265, 0.0
      $region36: #{tpu_custom_call.1} parent=31 // pred_fallthru
        _
      %v269 = vld [vmem:[%s252] sm:$0xff]
      %v270 = vld [vmem:[#allocation2] sm:$0xff]
      %271 = vmax.xlane.f32.xlu0 %v269
      %v272 = vpop.xlane.xlu0 %271
      %v273 = vmax.f32 %v270, %v272
      %v274 = vsub.f32 %v270, %v273
      %v275 = vmul.f32 %v274, 1.442695
      %v276 = vpow.pop %v275
      %278 = vset.pattern.permute.xlu0 0
      %279 = vperm.xlu0 %278, %v273
      %v280 = vpop.permute.xlu0 %279
      %v282 = vsub.f32 %v269, %v280
      %v283 = vmul.f32 %v282, 1.442695
      %v284 = vpow.pop %v283
      %285 = vadd.xlane.f32.xlu0 %v284
      %v286 = vpop.xlane.xlu0 %285
      %v287 = vld [vmem:[#allocation3] sm:$0xff]
      %v288 = vmul.f32 %v276, %v287
      %v289 = vadd.f32 %v288, %v286
      %vm290 = vcmask 7168
      %291 = vst.msk [vmem:[#allocation3] sm:$0xff] %vm290, %v289
      %292 = vst.msk [vmem:[#allocation2] sm:$0xff] %vm290, %v273
      %v293 = vld [vmem:[#allocation4] sm:$0xff]
      %294 = vadd.xlane.f32.xlu0 %v269
      %v295 = vpop.xlane.xlu0 %294
      %v296 = vadd.f32 %v293, %v295
      %297 = vst.msk [vmem:[#allocation4] sm:$0xff] %vm290, %v296
      // Predicated region
      $region37: #{tpu_custom_call.1} parent=31 // pred_check
        %p298 = pneg %p261
      $region38: #{tpu_custom_call.1} parent=31 // pred_check_branch
        %300 = sbr.rel (%p298) target = $region40
      $region39: #{tpu_custom_call.1} parent=31 // pred_region
        %v301 = vld [vmem:[%s241] sm:$0xff]
        %v302 = vld [vmem:[#allocation2] sm:$0xff]
        %v303 = vld [vmem:[#allocation3] sm:$0xff]
        %v304 = vlog2.pop %v303
        %v305 = vmul.f32 %v304, 0.6931472
        %v306 = vadd.f32 %v302, %v305
        %vm307 = vcmp.ne.s32.totalorder %v301, 4294967196
        %v308 = vld [vmem:[%s245] sm:$0xff]
        %v309 = vsub.f32 %v306, %v308
        %v310 = vld [vmem:[#allocation4] sm:$0xff]
        %v311 = vmul.f32 %v310, 0.0078125
        %v312 = vsub.f32 %v306, %v311
        %v313 = vmul.f32 %v309, 0.9
        %v314 = vmul.f32 %v312, 0.1
        %v315 = vadd.f32 %v313, %v314
        %v316 = vsel %vm307, %v315, 0.0
        %317 = vst.msk [vmem:[%s256] sm:$0xff] %vm290, %v316
        %v318 = vmul.f32 %v306, 0.0001
        %v319 = vmul.f32 %v318, %v306
        %v320 = vsel %vm307, %v319, 0.0
        %321 = vst.msk [vmem:[%s260] sm:$0xff] %vm290, %v320
      $region40: #{tpu_custom_call.1} parent=31 // pred_fallthru
        _
      %p322 = scmp.lt.s32.totalorder %s20, 1
      %s323 = scalar_select %p322, %s20, 1
      %s324 = smul.addr %s323, 8
      %s325 = scalar_lea.vmem %s3, %s324
      %p326 = scmp.lt.s32.totalorder %s20, 1
      %s327 = scalar_select %p326, %s20, 1
      %s328 = smul.addr %s327, 8
      %s329 = scalar_lea.vmem %s4, %s328
      // Predicated region
      $region41: #{tpu_custom_call.1} parent=31 // pred_check
        %p330 = pneg %p126
      $region42: #{tpu_custom_call.1} parent=31 // pred_check_branch
        %332 = sbr.rel (%p330) target = $region44
      $region43: #{tpu_custom_call.1} parent=31 // pred_region
        _
      $region44: #{tpu_custom_call.1} parent=31 // pred_fallthru
        _
      // Predicated region
      $region45: #{tpu_custom_call.1} parent=31 // pred_check
        %p333 = pneg %p152
      $region46: #{tpu_custom_call.1} parent=31 // pred_check_branch
        %335 = sbr.rel (%p333) target = $region48
      $region47: #{tpu_custom_call.1} parent=31 // pred_region
        _
      $region48: #{tpu_custom_call.1} parent=31 // pred_fallthru
        _
    $region32: #{tpu_custom_call.1} parent=5 // pred_fallthru
      _
    %p336 = scmp.le.s32.totalorder 2, %s11
    // Predicated region
    $region49: #{tpu_custom_call.1} parent=5 // pred_check
      %p337 = pneg %p336
    $region50: #{tpu_custom_call.1} parent=5 // pred_check_branch
      %339 = sbr.rel (%p337) target = $region52
    $region51: #{tpu_custom_call.1} parent=5 // pred_region
      %s340 = ssub.s32 %s11, 2
      // Predicated region
      $region53: #{tpu_custom_call.1} parent=51 // pred_check
        %p341 = pneg %p132
      $region54: #{tpu_custom_call.1} parent=51 // pred_check_branch
        %343 = sbr.rel (%p341) target = $region56
      $region55: #{tpu_custom_call.1} parent=51 // pred_region
        %p344 = scmp.lt.s32.totalorder %s22, 1
        %s345 = scalar_select %p344, %s22, 1
        %s346 = smul.addr %s345, 8
        %s347 = scalar_lea.vmem %s3, %s346
      $region56: #{tpu_custom_call.1} parent=51 // pred_fallthru
        _
      // Predicated region
      $region57: #{tpu_custom_call.1} parent=51 // pred_check
        %p348 = pneg %p158
      $region58: #{tpu_custom_call.1} parent=51 // pred_check_branch
        %350 = sbr.rel (%p348) target = $region60
      $region59: #{tpu_custom_call.1} parent=51 // pred_region
        %p351 = scmp.lt.s32.totalorder %s22, 1
        %s352 = scalar_select %p351, %s22, 1
        %s353 = smul.addr %s352, 8
        %s354 = scalar_lea.vmem %s4, %s353
      $region60: #{tpu_custom_call.1} parent=51 // pred_fallthru
        _
    $region52: #{tpu_custom_call.1} parent=5 // pred_fallthru
      _
  $region6: #{tpu_custom_call.1} parent=0 // loop_footer
    %s15 = sadd.s32 1, %s11
  $region7: #{tpu_custom_call.1} parent=0 // loop_footer_branch
    %10 = sbr.rel target = $region3
  $region8: #{tpu_custom_call.1} parent=0 // loop_exit
    _

</llo_original>
